<compile_context>
chip_gen: v5e
topology: v5e:2x2
jax: 0.10.0
libtpu: 0.0.40
codegen_flags: <defaults>
</compile_context>

<pallas_src>
import jax
import jax.numpy as jnp
from jax import lax
from jax.experimental import pallas as pl
from jax.experimental.pallas import tpu as pltpu


# ResNet-34 stage config: (out_channels, num_blocks, first_stride)
LAYERS = [(64, 3, 1), (128, 4, 2), (256, 6, 2), (512, 3, 2)]

_VMEM_LIMIT_CACHE = []


def _vmem_limit():
    """~48 MiB on v7x (64 MiB physical), ~100 MiB on v5e/v6e (128 MiB)."""
    if not _VMEM_LIMIT_CACHE:
        cap = 64 * 1024 * 1024
        try:
            info = pltpu.get_tpu_info()
            cap = int(getattr(info, "vmem_capacity_bytes", cap))
        except Exception:
            pass
        lim = min(max(cap - 16 * 1024 * 1024, 32 * 1024 * 1024),
                  100 * 1024 * 1024)
        _VMEM_LIMIT_CACHE.append(int(lim))
    return _VMEM_LIMIT_CACHE[0]


def _round_up(a, b):
    return ((a + b - 1) // b) * b


def _pick_tm_mm(M):
    # Large M tiles amortize the ~0.35us per-grid-step overhead; keep >= 2
    # grid steps when possible so the parallel axis shards across 2 TCs (v7x).
    for cand in (512, 256, 128):
        if M >= 2 * cand:
            return cand
    return max(16, min(_round_up(M, 16), 128))


def _conv_tiles(M, W):
    """Pick (tm, hb): M-tile rows and halo rows (hb >= W+1, hb | tm, 16-aligned)."""
    hb = 16
    while hb < W + 1:
        hb *= 2
    for cand in (512, 256, 128):
        if cand % hb == 0 and M >= 2 * cand:
            return cand, hb
    tm = max(hb, _round_up(M, hb))
    return tm, hb


# ----------------------------------------------------------------------------
# Pallas kernels
# ----------------------------------------------------------------------------
def _make_conv3x3_kernel(relu, has_res, W, hb, tm, Cin):
    """Stride-1 3x3 conv: bf16 halo window -> bf16 (tm, 9*Cin) patch scratch
    -> one K=9*Cin MXU matmul -> fused BN/residual/ReLU -> single store.

    Halo invariant: lo/hi block indices are clamped at the grid ends, so the
    halo may contain wrong rows there; every tap that would need a row outside
    [0, B*H*W) necessarily has h+oi or w+oj out of range and is zeroed by the
    per-row tap-validity bitmask, so the clamped rows never contribute.
    """
    def kernel(lo_ref, cur_ref, hi_ref, mask_ref, w_ref, s_ref, b_ref, *rest):
        if has_res:
            r_ref, o_ref, win_ref, patch_ref = rest
        else:
            o_ref, win_ref, patch_ref = rest

        # bf16 halo window, aligned stores only.
        win_ref[0:hb, :] = lo_ref[...]
        win_ref[hb:hb + tm, :] = cur_ref[...]
        win_ref[hb + tm:hb + tm + hb, :] = hi_ref[...]

        code = mask_ref[...]                     # (tm, 1) int32, bit t = tap t valid
        zero = jnp.zeros((), jnp.bfloat16)
        for t in range(9):                       # unrolled patch assembly
            oi = t // 3 - 1
            oj = t % 3 - 1
            start = hb + oi * W + oj             # static python int, >= 0
            tap = win_ref[pl.ds(start, tm), :]   # (tm, Cin) bf16, row-shifted
            valid = (code & (1 << t)) != 0
            patch_ref[:, t * Cin:(t + 1) * Cin] = jnp.where(valid, tap, zero)

        y = jnp.dot(patch_ref[...], w_ref[...],
                    preferred_element_type=jnp.float32)
        y = y * s_ref[...] + b_ref[...]          # folded BN
        if has_res:
            y = y + r_ref[...].astype(jnp.float32)
        if relu:
            y = jnp.maximum(y, 0.0)
        o_ref[...] = y.astype(o_ref.dtype)
    return kernel


def _make_pool_kernel(t_r, W, C):
    """MaxPool 3x3/s2/p1, H-subsampled output.  Vertical taps are stride-2
    pl.ds reads of a bf16 halo window; horizontal taps via pltpu.roll +
    lane-index masks.  Output keeps full width (W*C lanes); the width
    subsample is a cheap half-resolution XLA slice afterwards."""
    WC = W * C

    def kernel(lo_ref, cur_ref, upok_ref, o_ref, win_ref):
        win_ref[0:8, :] = lo_ref[...]
        win_ref[8:8 + 2 * t_r, :] = cur_ref[...]

        neg = jnp.asarray(-jnp.inf, dtype=jnp.bfloat16)
        center = win_ref[pl.ds(8, t_r, stride=2), :]     # input row 2q
        down = win_ref[pl.ds(9, t_r, stride=2), :]       # input row 2q+1
        up = win_ref[pl.ds(7, t_r, stride=2), :]         # input row 2q-1
        up = jnp.where(upok_ref[...] != 0, up, neg)      # mask ho==0 rows
        vmax = jnp.maximum(jnp.maximum(center, down), up)

        lane = lax.broadcasted_iota(jnp.int32, (t_r, WC), 1)
        left = pltpu.roll(vmax, shift=C, axis=1)         # column w-1
        left = jnp.where(lane >= C, left, neg)
        right = pltpu.roll(vmax, shift=WC - C, axis=1)   # column w+1
        right = jnp.where(lane < WC - C, right, neg)
        o_ref[...] = jnp.maximum(jnp.maximum(vmax, left), right).astype(o_ref.dtype)
    return kernel


def _make_mm_kernel(relu):
    """bf16 matmul + fused folded-BN (+ ReLU) epilogue (strided convs only)."""
    def kernel(x_ref, w_ref, s_ref, b_ref, o_ref):
        y = jnp.dot(x_ref[...], w_ref[...], preferred_element_type=jnp.float32)
        y = y * s_ref[...] + b_ref[...]
        if relu:
            y = jnp.maximum(y, 0.0)
        o_ref[...] = y.astype(o_ref.dtype)
    return kernel


def _head_kernel(f_ref, w_ref, b_ref, a_ref, soft_ref, label_ref):
    # f_ref: (bs, S, C) bf16 -- S = N * Hf * Wf positions of the stitched map
    f = f_ref[...].astype(jnp.float32)
    s = f.shape[1]
    g = jnp.sum(f, axis=1) * (1.0 / s)                        # GAP -> (bs, C)
    logits = jnp.dot(g, w_ref[...], preferred_element_type=jnp.float32) + b_ref[...]
    m = jnp.max(logits, axis=1, keepdims=True)
    e = jnp.exp(logits - m)
    p = e / jnp.sum(e, axis=1, keepdims=True)                 # softmax(dim=1)
    soft_ref[...] = p
    label_ref[...] = jnp.sum(p * a_ref[...], axis=1, keepdims=True)


# ----------------------------------------------------------------------------
# Wrappers
# ----------------------------------------------------------------------------
def _tap_mask_codes(Mpad, H, W):
    """Per-flattened-row int32 with bit t = validity of 3x3 tap t."""
    rows = jnp.arange(Mpad, dtype=jnp.int32)
    h = (rows // W) % H
    w = rows % W
    code = jnp.zeros((Mpad,), jnp.int32)
    for t in range(9):
        oi = t // 3 - 1
        oj = t % 3 - 1
        valid = ((h + oi >= 0) & (h + oi < H) & (w + oj >= 0) & (w + oj < W))
        code = code | (valid.astype(jnp.int32) << t)
    return code.reshape(Mpad, 1)


def conv3x3_s1(x, w, scale, bias, *, relu, residual=None):
    """3x3/s1/p1 conv + folded BN (+residual) (+ReLU), no im2col in HBM."""
    Bc, H, W, Cin = x.shape
    Cout = w.shape[-1]
    M = Bc * H * W
    tm, hb = _conv_tiles(M, W)
    Mpad = _round_up(M, tm)

    A = x.reshape(M, Cin)
    if Mpad != M:
        A = jnp.pad(A, ((0, Mpad - M), (0, 0)))
    codes = _tap_mask_codes(Mpad, H, W)
    w2 = w.reshape(9 * Cin, Cout)                 # tap-major, channel-minor

    r = tm // hb
    nhb = Mpad // hb
    args = [A, A, A, codes, w2, scale, bias]
    in_specs = [
        pl.BlockSpec((hb, Cin), lambda i: (jnp.maximum(i * r - 1, 0), 0)),
        pl.BlockSpec((tm, Cin), lambda i: (i, 0)),
        pl.BlockSpec((hb, Cin), lambda i: (jnp.minimum((i + 1) * r, nhb - 1), 0)),
        pl.BlockSpec((tm, 1), lambda i: (i, 0)),
        pl.BlockSpec((9 * Cin, Cout), lambda i: (0, 0)),
        pl.BlockSpec((1, Cout), lambda i: (0, 0)),
        pl.BlockSpec((1, Cout), lambda i: (0, 0)),
    ]
    has_res = residual is not None
    if has_res:
        R = residual.reshape(M, Cout)
        if Mpad != M:
            R = jnp.pad(R, ((0, Mpad - M), (0, 0)))
        args.append(R)
        in_specs.append(pl.BlockSpec((tm, Cout), lambda i: (i, 0)))

    out = pl.pallas_call(
        _make_conv3x3_kernel(relu, has_res, W, hb, tm, Cin),
        out_shape=jax.ShapeDtypeStruct((Mpad, Cout), jnp.bfloat16),
        grid=(Mpad // tm,),
        in_specs=in_specs,
        out_specs=pl.BlockSpec((tm, Cout), lambda i: (i, 0)),
        scratch_shapes=[pltpu.VMEM((tm + 2 * hb, Cin), jnp.bfloat16),
                        pltpu.VMEM((tm, 9 * Cin), jnp.bfloat16)],
        compiler_params=pltpu.CompilerParams(
            dimension_semantics=("parallel",),
            vmem_limit_bytes=_vmem_limit()),
    )(*args)
    return out[:M].reshape(Bc, H, W, Cout)


def maxpool_3x3_s2(x):
    """nn.MaxPool2d(3, stride=2, padding=1) in NHWC (H-subsampled in-kernel)."""
    Bc, H, W, C = x.shape
    assert H % 2 == 0 and W % 2 == 0, "maxpool path assumes even spatial dims"
    Ho, Wo = H // 2, W // 2
    Q = Bc * Ho                                    # output image-rows
    t_r = 8
    while t_r * 2 <= 64 and Q >= 4 * t_r:
        t_r *= 2
    Qpad = _round_up(Q, t_r)

    Xr = x.reshape(Bc * H, W * C)
    if Qpad != Q:
        Xr = jnp.pad(Xr, ((0, 2 * (Qpad - Q)), (0, 0)))
    upok = ((jnp.arange(Qpad, dtype=jnp.int32) % Ho) != 0)
    upok = upok.astype(jnp.int32).reshape(Qpad, 1)

    rr = (2 * t_r) // 8
    out = pl.pallas_call(
        _make_pool_kernel(t_r, W, C),
        out_shape=jax.ShapeDtypeStruct((Qpad, W * C), jnp.bfloat16),
        grid=(Qpad // t_r,),
        in_specs=[
            pl.BlockSpec((8, W * C), lambda i: (jnp.maximum(i * rr - 1, 0), 0)),
            pl.BlockSpec((2 * t_r, W * C), lambda i: (i, 0)),
            pl.BlockSpec((t_r, 1), lambda i: (i, 0)),
        ],
        out_specs=pl.BlockSpec((t_r, W * C), lambda i: (i, 0)),
        scratch_shapes=[pltpu.VMEM((8 + 2 * t_r, W * C), jnp.bfloat16)],
        compiler_params=pltpu.CompilerParams(
            dimension_semantics=("parallel",),
            vmem_limit_bytes=_vmem_limit()),
    )(Xr, Xr, upok)
    half = out[:Q].reshape(Bc, Ho, W, C)
    # TODO(synk): width subsample left to XLA on half-resolution data; full
    #             in-kernel W compaction needs a lane-gather epilogue.
    return half[:, :, ::2, :]


def _im2col(x, kh, kw, stride, pad):
    B, H, W, C = x.shape
    if pad > 0:
        x = jnp.pad(x, ((0, 0), (pad, pad), (pad, pad), (0, 0)))
    Hp, Wp = H + 2 * pad, W + 2 * pad
    Ho = (Hp - kh) // stride + 1
    Wo = (Wp - kw) // stride + 1
    cols = []
    for i in range(kh):
        for j in range(kw):
            cols.append(x[:, i:i + stride * (Ho - 1) + 1:stride,
                          j:j + stride * (Wo - 1) + 1:stride, :])
    return cols, Ho, Wo


def conv_bn_strided(x, w, scale, bias, *, stride, pad, relu):
    """Strided conv (stem 7x7/s2, 3x3/s2, 1x1/s2) via small im2col + matmul."""
    B, H, W, Cin = x.shape
    kh, kw, _, Cout = w.shape
    cols, Ho, Wo = _im2col(x, kh, kw, stride, pad)
    patches = cols[0] if len(cols) == 1 else jnp.concatenate(cols, axis=-1)
    M = B * Ho * Wo
    K = kh * kw * Cin
    x2 = patches.reshape(M, K)
    w2 = w.reshape(K, Cout)

    tm = _pick_tm_mm(M)
    Mpad = _round_up(M, tm)
    if Mpad != M:
        x2 = jnp.pad(x2, ((0, Mpad - M), (0, 0)))

    out = pl.pallas_call(
        _make_mm_kernel(relu),
        out_shape=jax.ShapeDtypeStruct((Mpad, Cout), jnp.bfloat16),
        grid=(Mpad // tm,),
        in_specs=[
            pl.BlockSpec((tm, K), lambda i: (i, 0)),
            pl.BlockSpec((K, Cout), lambda i: (0, 0)),
            pl.BlockSpec((1, Cout), lambda i: (0, 0)),
            pl.BlockSpec((1, Cout), lambda i: (0, 0)),
        ],
        out_specs=pl.BlockSpec((tm, Cout), lambda i: (i, 0)),
        compiler_params=pltpu.CompilerParams(
            dimension_semantics=("parallel",),
            vmem_limit_bytes=_vmem_limit()),
    )(x2, w2, scale, bias)
    return out[:M].reshape(B, Ho, Wo, Cout)


def head(feats, fc_w, fc_b, a_vec):
    """GAP + Linear + Softmax + expected-label, fused in one kernel."""
    bs, S, C = feats.shape
    classes = fc_w.shape[1]
    soft, label = pl.pallas_call(
        _head_kernel,
        out_shape=[jax.ShapeDtypeStruct((bs, classes), jnp.float32),
                   jax.ShapeDtypeStruct((bs, 1), jnp.float32)],
        grid=(1,),
        in_specs=[pl.BlockSpec((bs, S, C), lambda i: (0, 0, 0)),
                  pl.BlockSpec((C, classes), lambda i: (0, 0)),
                  pl.BlockSpec((1, classes), lambda i: (0, 0)),
                  pl.BlockSpec((1, classes), lambda i: (0, 0))],
        out_specs=[pl.BlockSpec((bs, classes), lambda i: (0, 0)),
                   pl.BlockSpec((bs, 1), lambda i: (0, 0))],
        compiler_params=pltpu.CompilerParams(vmem_limit_bytes=_vmem_limit()),
    )(feats, fc_w, fc_b, a_vec)
    return label[:, 0], soft


# ----------------------------------------------------------------------------
# Deterministic parameter construction (shapes match torchvision resnet34)
# ----------------------------------------------------------------------------
def init_params(key, classes=6):
    keys = iter(jax.random.split(key, 256))

    def nk():
        return next(keys)

    def conv_w(kh, kw, cin, cout):
        std = (2.0 / (kh * kw * cin)) ** 0.5
        w = jax.random.normal(nk(), (kh, kw, cin, cout), jnp.float32) * std
        return w.astype(jnp.bfloat16)            # bf16 MXU operands

    def bn_fold(c):
        gamma = 1.0 + 0.1 * jax.random.normal(nk(), (1, c), jnp.float32)
        beta = 0.1 * jax.random.normal(nk(), (1, c), jnp.float32)
        mean = 0.1 * jax.random.normal(nk(), (1, c), jnp.float32)
        var = jnp.ones((1, c), jnp.float32)
        scale = gamma / jnp.sqrt(var + 1e-5)
        bias = beta - mean * scale
        return scale, bias

    params = {}
    params['conv1_w'] = conv_w(7, 7, 3, 64)
    params['bn1_scale'], params['bn1_bias'] = bn_fold(64)

    blocks = []
    in_c = 64
    for cout, nb, stride in LAYERS:
        layer = []
        for bi in range(nb):
            s = stride if bi == 0 else 1
            blk = {}
            blk['w1'] = conv_w(3, 3, in_c, cout)
            blk['s1'], blk['b1'] = bn_fold(cout)
            blk['w2'] = conv_w(3, 3, cout, cout)
            blk['s2'], blk['b2'] = bn_fold(cout)
            if s != 1 or in_c != cout:
                blk['wd'] = conv_w(1, 1, in_c, cout)
                blk['sd'], blk['bd'] = bn_fold(cout)
            layer.append(blk)
            in_c = cout
        blocks.append(layer)
    params['blocks'] = blocks

    params['fc_w'] = jax.random.normal(nk(), (512, classes), jnp.float32) * (512.0 ** -0.5)
    params['fc_b'] = 0.01 * jax.random.normal(nk(), (1, classes), jnp.float32)
    return params


# ----------------------------------------------------------------------------
# Forward pass (matches Resnet34_afix.forward)
# ----------------------------------------------------------------------------
def resnet34_afix_forward(x_nchw, params, N, classes=6):
    bs, c, h, w = x_nchw.shape
    w2 = w // N
    # widthN_to_bsN: split width into N chunks -> stack into batch
    x = x_nchw.reshape(bs, c, h, N, w2).transpose(0, 3, 1, 2, 4).reshape(bs * N, c, h, w2)
    # NCHW -> NHWC, bf16 activations for the kernels
    x = jnp.transpose(x, (0, 2, 3, 1)).astype(jnp.bfloat16)

    # encoder = resnet34 children[:-2]
    x = conv_bn_strided(x, params['conv1_w'], params['bn1_scale'], params['bn1_bias'],
                        stride=2, pad=3, relu=True)
    x = maxpool_3x3_s2(x)
    for li, (cout, nb, stride) in enumerate(LAYERS):
        for bi in range(nb):
            blk = params['blocks'][li][bi]
            s = stride if bi == 0 else 1
            identity = x
            if s == 1:
                out = conv3x3_s1(x, blk['w1'], blk['s1'], blk['b1'], relu=True)
            else:
                out = conv_bn_strided(x, blk['w1'], blk['s1'], blk['b1'],
                                      stride=s, pad=1, relu=True)
            if 'wd' in blk:
                # TODO(synk): fuse this 1x1/s2 downsample with the 3x3/s2 conv
                #             above into one pallas_call (shared input read).
                identity = conv_bn_strided(x, blk['wd'], blk['sd'], blk['bd'],
                                           stride=s, pad=0, relu=False)
            # conv2 -> bn2 -> (+identity) -> relu, fused in one kernel
            x = conv3x3_s1(out, blk['w2'], blk['s2'], blk['b2'],
                           relu=True, residual=identity)

    # gap(bsN_to_widthN(f)) == mean over all (N, Hf, Wf) positions per sample
    Bf, Hf, Wf, Cf = x.shape
    feats = x.reshape(bs, N * Hf * Wf, Cf)

    a_vec = jnp.arange(classes, dtype=jnp.float32).reshape(1, classes)  # buffer 'a'
    pred_label, pred_softmax = head(feats, params['fc_w'], params['fc_b'], a_vec)
    return pred_label, pred_softmax


# ----------------------------------------------------------------------------
if __name__ == "__main__":
    key = jax.random.PRNGKey(0)
    classes = 6
    N = 2                           # small N for the test (module default is 25)
    bs, C, H, Wtot = 2, 3, 32, 32   # Wtot must be divisible by N

    kx, kp = jax.random.split(key)
    x = jax.random.normal(kx, (bs, C, H, Wtot), jnp.float32)   # NCHW, like PyTorch
    params = init_params(kp, classes=classes)

    pred_label, pred_softmax = resnet34_afix_forward(x, params, N, classes=classes)
    jax.block_until_ready(pred_label)
    jax.block_until_ready(pred_softmax)

    assert pred_label.shape == (bs,)
    assert pred_softmax.shape == (bs, classes)
    assert bool(jnp.all(jnp.isfinite(pred_label)))
    assert bool(jnp.all(jnp.isfinite(pred_softmax)))
    print("KERNEL_OK")
</pallas_src>

<mosaic_0001>
module attributes {stable_mosaic.version = 11 : i64} {
  func.func @kernel(%arg0: i32, %arg1: memref<256x147xbf16, #tpu.memory_space<vmem>>, %arg2: memref<147x64xbf16, #tpu.memory_space<vmem>>, %arg3: memref<1x64xf32, #tpu.memory_space<vmem>>, %arg4: memref<1x64xf32, #tpu.memory_space<vmem>>, %arg5: memref<256x64xbf16, #tpu.memory_space<vmem>>) attributes {dimension_semantics = [#tpu.dimension_semantics<parallel>], iteration_bounds = array<i64: 2>, scalar_prefetch = 0 : i64, scratch_operands = 0 : i64, tpu.core_type = #tpu.core_type<tc>, window_params = [{transform_indices = @transform_0, window_bounds = array<i64: 256, 147>}, {pipeline_mode = #tpu.pipeline_mode<synchronous>, transform_indices = @transform_1, window_bounds = array<i64: 147, 64>}, {pipeline_mode = #tpu.pipeline_mode<synchronous>, transform_indices = @transform_2, window_bounds = array<i64: 1, 64>}, {pipeline_mode = #tpu.pipeline_mode<synchronous>, transform_indices = @transform_3, window_bounds = array<i64: 1, 64>}, {transform_indices = @transform_4, window_bounds = array<i64: 256, 64>}]} {
    %c0 = arith.constant 0 : index
    %c0_0 = arith.constant 0 : index
    %0 = vector.load %arg1[%c0, %c0_0] : memref<256x147xbf16, #tpu.memory_space<vmem>>, vector<256x147xbf16>
    %c0_1 = arith.constant 0 : index
    %c0_2 = arith.constant 0 : index
    %1 = vector.load %arg2[%c0_1, %c0_2] : memref<147x64xbf16, #tpu.memory_space<vmem>>, vector<147x64xbf16>
    %cst = arith.constant dense<0.000000e+00> : vector<256x64xf32>
    %2 = tpu.matmul %0, %1, %cst {dimension_numbers = #tpu.dot_dimension_numbers<[1], [0], [0], [1], [0, 0, 1, 1], [], []>} : vector<256x147xbf16>, vector<147x64xbf16>, vector<256x64xf32> -> vector<256x64xf32>
    %c0_3 = arith.constant 0 : index
    %c0_4 = arith.constant 0 : index
    %3 = vector.load %arg3[%c0_3, %c0_4] : memref<1x64xf32, #tpu.memory_space<vmem>>, vector<1x64xf32>
    %4 = vector.broadcast %3 : vector<1x64xf32> to vector<256x64xf32>
    %5 = arith.mulf %2, %4 : vector<256x64xf32>
    %c0_5 = arith.constant 0 : index
    %c0_6 = arith.constant 0 : index
    %6 = vector.load %arg4[%c0_5, %c0_6] : memref<1x64xf32, #tpu.memory_space<vmem>>, vector<1x64xf32>
    %7 = vector.broadcast %6 : vector<1x64xf32> to vector<256x64xf32>
    %8 = arith.addf %5, %7 : vector<256x64xf32>
    %cst_7 = arith.constant 0.000000e+00 : f32
    %9 = vector.broadcast %cst_7 : f32 to vector<256x64xf32>
    %10 = arith.maximumf %8, %9 : vector<256x64xf32>
    %11 = arith.truncf %10 : vector<256x64xf32> to vector<256x64xbf16>
    %c0_8 = arith.constant 0 : index
    %c0_9 = arith.constant 0 : index
    %12 = vector.load %arg5[%c0_8, %c0_9] : memref<256x64xbf16, #tpu.memory_space<vmem>>, vector<256x64xbf16>
    tpu.vector_store %arg5[%c0_8, %c0_9], %11 {strides = array<i32>} : memref<256x64xbf16, #tpu.memory_space<vmem>>, vector<256x64xbf16>,
    return
  }
  func.func @transform_0(%arg0: i32) -> (i32, i32) {
    %c0_i32 = arith.constant 0 : i32
    %c0_i32_0 = arith.constant 0 : i32
    return %arg0, %c0_i32 : i32, i32
  }
  func.func @transform_1(%arg0: i32) -> (i32, i32) {
    %c0_i32 = arith.constant 0 : i32
    %c0_i32_0 = arith.constant 0 : i32
    %c0_i32_1 = arith.constant 0 : i32
    return %c0_i32, %c0_i32_0 : i32, i32
  }
  func.func @transform_2(%arg0: i32) -> (i32, i32) {
    %c0_i32 = arith.constant 0 : i32
    %c0_i32_0 = arith.constant 0 : i32
    %c0_i32_1 = arith.constant 0 : i32
    return %c0_i32, %c0_i32_0 : i32, i32
  }
  func.func @transform_3(%arg0: i32) -> (i32, i32) {
    %c0_i32 = arith.constant 0 : i32
    %c0_i32_0 = arith.constant 0 : i32
    %c0_i32_1 = arith.constant 0 : i32
    return %c0_i32, %c0_i32_0 : i32, i32
  }
  func.func @transform_4(%arg0: i32) -> (i32, i32) {
    %c0_i32 = arith.constant 0 : i32
    %c0_i32_0 = arith.constant 0 : i32
    return %arg0, %c0_i32 : i32, i32
  }
}

</mosaic_0001>

<llo_original>
// kernel: tpu_custom_call.1
$region0: #{tpu_custom_call.1}
  #allocation0 [shape = 'u32[]', space=smem, size = 0x4, offset = 0x4, fixed_abs, tag = 'smem constant byte address 0x4 - core index']
  #allocation1 [shape = 'u32[72,128]{1,0:T(1,128)}', space=vmem, size = 0x9000, scoped, tag = 'internal scratch']
  %s0 = inlined_call_operand.vmem [shape: bf16[512,147], index: 0, kind: input, shape index: {}]
  %s1 = inlined_call_operand.vmem [shape: bf16[147,64], index: 1, kind: input, shape index: {}]
  %s2 = inlined_call_operand.vmem [shape: f32[1,64], index: 2, kind: input, shape index: {}]
  %s3 = inlined_call_operand.vmem [shape: f32[1,64], index: 3, kind: input, shape index: {}]
  %s4 = inlined_call_operand.vmem [shape: bf16[512,64], index: 4, kind: output, shape index: {}]
  %s5 = sld [smem:[#allocation0]]
  $region49: #{tpu_custom_call.1} parent=0
    _
  %s7 = ssub.s32 1, %s5
  %s8 = scalar_select 0, %s7, %s5
  loop: start=0, step=1, limit=4
  $region2: #{tpu_custom_call.1} parent=0 // loop_pre_header
    _
  $region3: #{tpu_custom_call.1} parent=0 // loop_header
    %s10 = sphi 0, %s14
    %p11 = scmp.ge.s32.totalorder %s10, 4
    %s20 = sphi 0, %s22
    %s23 = sphi 0, %s20
    %s24 = sphi 0, %s23
    %s40 = sphi 0, %s24
    %s44 = sphi 0, %s44
    %s46 = sphi 0, %s44
    %s47 = sphi 0, %s46
    %s61 = sphi 0, %s47
    %s65 = sphi 0, %s65
    %s67 = sphi 0, %s65
    %s68 = sphi 0, %s67
    %s82 = sphi 0, %s68
    %s86 = sphi 0, %s86
    %s88 = sphi 0, %s86
    %s89 = sphi 0, %s88
    %s103 = sphi 0, %s89
    %s109 = sphi 0, %s111
    %s112 = sphi 0, %s109
    %s113 = sphi 0, %s112
    %s129 = sphi 0, %s113
  $region4: #{tpu_custom_call.1} parent=0 // loop_header_branch
    %13 = sbr.rel (%p11) target = $region8
  $region5: #{tpu_custom_call.1} parent=0 // loop_body
    %s15 = ssub.s32 %s10, 1
    %s16 = ssub.s32 %s10, 2
    %s17 = sadd.s32 %s10, 1
    %s18 = ssub.s32 %s10, %s17
    %p19 = scmp.eq.s32.totalorder %s18, 0
    %s21 = sadd.s32 %s20, 1
    %s22 = scalar_select %p19, %s20, %s21
    %p25 = pneg %p19
    %p26 = scmp.eq.s32.totalorder %s10, 1
    %p27 = por %p25, %p26
    %p28 = scmp.ne.s32.totalorder %s20, %s23
    %p29 = scmp.eq.s32.totalorder %s10, 0
    %p30 = por %p28, %p29
    %p31 = scmp.ne.s32.totalorder %s20, %s23
    %p32 = scmp.eq.s32.totalorder %s15, 1
    %p33 = por %p31, %p32
    %p34 = scmp.ne.s32.totalorder %s23, %s24
    %p35 = scmp.eq.s32.totalorder %s15, 0
    %p36 = por %p34, %p35
    %p37 = scmp.ne.s32.totalorder %s23, %s24
    %p38 = scmp.eq.s32.totalorder %s16, 1
    %p39 = por %p37, %p38
    %p41 = scmp.ne.s32.totalorder %s24, %s40
    %p42 = scmp.eq.s32.totalorder %s16, 0
    %p43 = por %p41, %p42
    %s45 = sadd.s32 %s44, 1
    %p48 = scmp.eq.s32.totalorder %s10, 1
    %p49 = scmp.ne.s32.totalorder %s44, %s46
    %p50 = scmp.eq.s32.totalorder %s10, 0
    %p51 = por %p49, %p50
    %p52 = scmp.ne.s32.totalorder %s44, %s46
    %p53 = scmp.eq.s32.totalorder %s15, 1
    %p54 = por %p52, %p53
    %p55 = scmp.ne.s32.totalorder %s46, %s47
    %p56 = scmp.eq.s32.totalorder %s15, 0
    %p57 = por %p55, %p56
    %p58 = scmp.ne.s32.totalorder %s46, %s47
    %p59 = scmp.eq.s32.totalorder %s16, 1
    %p60 = por %p58, %p59
    %p62 = scmp.ne.s32.totalorder %s47, %s61
    %p63 = scmp.eq.s32.totalorder %s16, 0
    %p64 = por %p62, %p63
    %s66 = sadd.s32 %s65, 1
    %p69 = scmp.eq.s32.totalorder %s10, 1
    %p70 = scmp.ne.s32.totalorder %s65, %s67
    %p71 = scmp.eq.s32.totalorder %s10, 0
    %p72 = por %p70, %p71
    %p73 = scmp.ne.s32.totalorder %s65, %s67
    %p74 = scmp.eq.s32.totalorder %s15, 1
    %p75 = por %p73, %p74
    %p76 = scmp.ne.s32.totalorder %s67, %s68
    %p77 = scmp.eq.s32.totalorder %s15, 0
    %p78 = por %p76, %p77
    %p79 = scmp.ne.s32.totalorder %s67, %s68
    %p80 = scmp.eq.s32.totalorder %s16, 1
    %p81 = por %p79, %p80
    %p83 = scmp.ne.s32.totalorder %s68, %s82
    %p84 = scmp.eq.s32.totalorder %s16, 0
    %p85 = por %p83, %p84
    %s87 = sadd.s32 %s86, 1
    %p90 = scmp.eq.s32.totalorder %s10, 1
    %p91 = scmp.ne.s32.totalorder %s86, %s88
    %p92 = scmp.eq.s32.totalorder %s10, 0
    %p93 = por %p91, %p92
    %p94 = scmp.ne.s32.totalorder %s86, %s88
    %p95 = scmp.eq.s32.totalorder %s15, 1
    %p96 = por %p94, %p95
    %p97 = scmp.ne.s32.totalorder %s88, %s89
    %p98 = scmp.eq.s32.totalorder %s15, 0
    %p99 = por %p97, %p98
    %p100 = scmp.ne.s32.totalorder %s88, %s89
    %p101 = scmp.eq.s32.totalorder %s16, 1
    %p102 = por %p100, %p101
    %p104 = scmp.ne.s32.totalorder %s89, %s103
    %p105 = scmp.eq.s32.totalorder %s16, 0
    %p106 = por %p104, %p105
    %s107 = ssub.s32 %s10, %s17
    %p108 = scmp.eq.s32.totalorder %s107, 0
    %s110 = sadd.s32 %s109, 1
    %s111 = scalar_select %p108, %s109, %s110
    %p114 = pneg %p108
    %p115 = scmp.eq.s32.totalorder %s10, 1
    %p116 = por %p114, %p115
    %p117 = scmp.ne.s32.totalorder %s109, %s112
    %p118 = scmp.eq.s32.totalorder %s10, 0
    %p119 = por %p117, %p118
    %p120 = scmp.ne.s32.totalorder %s109, %s112
    %p121 = scmp.eq.s32.totalorder %s15, 1
    %p122 = por %p120, %p121
    %p123 = scmp.ne.s32.totalorder %s112, %s113
    %p124 = scmp.eq.s32.totalorder %s15, 0
    %p125 = por %p123, %p124
    %p126 = scmp.ne.s32.totalorder %s112, %s113
    %p127 = scmp.eq.s32.totalorder %s16, 1
    %p128 = por %p126, %p127
    %p130 = scmp.ne.s32.totalorder %s113, %s129
    %p131 = scmp.eq.s32.totalorder %s16, 0
    %p132 = por %p130, %p131
    %p133 = scmp.le.s32.totalorder 1, %s10
    %p134 = scmp.lt.s32.totalorder %s10, 3
    %p135 = pnand %p133, %p134
    %p136 = pneg %p135
    // Predicated region
    $region9: #{tpu_custom_call.1} parent=5 // pred_check
      _
    $region10: #{tpu_custom_call.1} parent=5 // pred_check_branch
      %138 = sbr.rel (%p135) target = $region12
    $region11: #{tpu_custom_call.1} parent=5 // pred_region
      %s139 = ssub.s32 %s10, 1
      // Predicated region
      $region13: #{tpu_custom_call.1} parent=11 // pred_check
        %p140 = pneg %p57
      $region14: #{tpu_custom_call.1} parent=11 // pred_check_branch
        %142 = sbr.rel (%p140) target = $region16
      $region15: #{tpu_custom_call.1} parent=11 // pred_region
        _
      $region16: #{tpu_custom_call.1} parent=11 // pred_fallthru
        _
      // Predicated region
      $region17: #{tpu_custom_call.1} parent=11 // pred_check
        %p143 = pneg %p78
      $region18: #{tpu_custom_call.1} parent=11 // pred_check_branch
        %145 = sbr.rel (%p143) target = $region20
      $region19: #{tpu_custom_call.1} parent=11 // pred_region
        _
      $region20: #{tpu_custom_call.1} parent=11 // pred_fallthru
        _
      // Predicated region
      $region21: #{tpu_custom_call.1} parent=11 // pred_check
        %p146 = pneg %p99
      $region22: #{tpu_custom_call.1} parent=11 // pred_check_branch
        %148 = sbr.rel (%p146) target = $region24
      $region23: #{tpu_custom_call.1} parent=11 // pred_region
        _
      $region24: #{tpu_custom_call.1} parent=11 // pred_fallthru
        _
    $region12: #{tpu_custom_call.1} parent=5 // pred_fallthru
      _
    %p149 = scmp.lt.s32.totalorder %s10, 2
    // Predicated region
    $region25: #{tpu_custom_call.1} parent=5 // pred_check
      %p150 = pneg %p149
    $region26: #{tpu_custom_call.1} parent=5 // pred_check_branch
      %152 = sbr.rel (%p150) target = $region28
    $region27: #{tpu_custom_call.1} parent=5 // pred_region
      // Predicated region
      $region29: #{tpu_custom_call.1} parent=27 // pred_check
        %p153 = pneg %p30
      $region30: #{tpu_custom_call.1} parent=27 // pred_check_branch
        %155 = sbr.rel (%p153) target = $region32
      $region31: #{tpu_custom_call.1} parent=27 // pred_region
        %s156 = smul.u32 32, %s10
        %p157 = scmp.lt.s32.totalorder %s156, 63
        %s158 = scalar_select %p157, %s156, 63
        %s159 = smul.addr %s158, 2
        %s160 = smul.addr %s159, 4
        %s161 = scalar_lea.vmem %s0, %s160
        %s162 = smul.u32 32, %s10
      $region32: #{tpu_custom_call.1} parent=27 // pred_fallthru
        _
    $region28: #{tpu_custom_call.1} parent=5 // pred_fallthru
      _
    %p163 = scmp.le.s32.totalorder 1, %s10
    %p164 = scmp.lt.s32.totalorder %s10, 3
    %p165 = pnand %p163, %p164
    %p166 = pneg %p165
    // Predicated region
    $region33: #{tpu_custom_call.1} parent=5 // pred_check
      _
    $region34: #{tpu_custom_call.1} parent=5 // pred_check_branch
      %168 = sbr.rel (%p165) target = $region36
    $region35: #{tpu_custom_call.1} parent=5 // pred_region
      %s169 = ssub.s32 %s10, 1
      %s170 = smul.u32 32, %s15
      %p171 = scmp.lt.s32.totalorder %s170, 63
      %s172 = scalar_select %p171, %s170, 63
      %s173 = smul.addr %s172, 2
      %s174 = smul.addr %s173, 4
      %s175 = scalar_lea.vmem %s0, %s174
      %p176 = pneg %p36
      %p177 = pneg %p33
      %p178 = pneg %p57
      %p179 = pneg %p54
      %p180 = pneg %p78
      %p181 = pneg %p75
      %p182 = pneg %p99
      %p183 = pneg %p96
      %p184 = pneg %p125
      %p185 = pneg %p122
      %s186 = smul.u32 32, %s15
      %p187 = scmp.lt.s32.totalorder %s186, 63
      %s188 = scalar_select %p187, %s186, 63
      %s189 = smul.addr %s188, 4
      %s190 = scalar_lea.vmem %s4, %s189
      %s191 = smul.u32 32, %s15
      %p192 = scmp.lt.s32.totalorder %s191, 63
      %s193 = scalar_select %p192, %s191, 63
      %s194 = smul.addr %s193, 2
      %s195 = smul.addr %s194, 4
      %s196 = scalar_lea.vmem %s0, %s195
      %s197 = smul.u32 32, %s15
      %s198 = smul.u32 32, %s15
      %p199 = scmp.lt.s32.totalorder %s198, 63
      %s200 = scalar_select %p199, %s198, 63
      %s201 = smul.addr %s200, 4
      %s202 = scalar_lea.vmem %s4, %s201
      %s203 = smul.u32 32, %s15
      %v205 = vld [vmem:[%s196] sm:$0xff]
      %v206 = vld [vmem:[%s196 + $0x8] sm:$0xff]
      %v207 = vld [vmem:[%s196 + $0x10] sm:$0xff]
      %v208 = vld [vmem:[%s196 + $0x18] sm:$0xff]
      %v209 = vld [vmem:[%s196 + $0x20] sm:$0xff]
      %v210 = vld [vmem:[%s196 + $0x28] sm:$0xff]
      %v211 = vld [vmem:[%s196 + $0x30] sm:$0xff]
      %v212 = vld [vmem:[%s196 + $0x38] sm:$0xff]
      %v213 = vld [vmem:[%s196 + $0x40] sm:$0xff]
      %v214 = vld [vmem:[%s196 + $0x48] sm:$0xff]
      %v215 = vld [vmem:[%s196 + $0x50] sm:$0xff]
      %v216 = vld [vmem:[%s196 + $0x58] sm:$0xff]
      %v217 = vld [vmem:[%s196 + $0x60] sm:$0xff]
      %v218 = vld [vmem:[%s196 + $0x68] sm:$0xff]
      %v219 = vld [vmem:[%s196 + $0x70] sm:$0xff]
      %v220 = vld [vmem:[%s196 + $0x78] sm:$0xff]
      %v221 = vld [vmem:[%s196 + $0x80] sm:$0xff]
      %v222 = vld [vmem:[%s196 + $0x88] sm:$0xff]
      %v223 = vld [vmem:[%s196 + $0x90] sm:$0xff]
      %v224 = vld [vmem:[%s196 + $0x98] sm:$0xff]
      %v225 = vld [vmem:[%s196 + $0xa0] sm:$0xff]
      %v226 = vld [vmem:[%s196 + $0xa8] sm:$0xff]
      %v227 = vld [vmem:[%s196 + $0xb0] sm:$0xff]
      %v228 = vld [vmem:[%s196 + $0xb8] sm:$0xff]
      %v229 = vld [vmem:[%s196 + $0xc0] sm:$0xff]
      %v230 = vld [vmem:[%s196 + $0xc8] sm:$0xff]
      %v231 = vld [vmem:[%s196 + $0xd0] sm:$0xff]
      %v232 = vld [vmem:[%s196 + $0xd8] sm:$0xff]
      %v233 = vld [vmem:[%s196 + $0xe0] sm:$0xff]
      %v234 = vld [vmem:[%s196 + $0xe8] sm:$0xff]
      %v235 = vld [vmem:[%s196 + $0xf0] sm:$0xff]
      %v236 = vld [vmem:[%s196 + $0xf8] sm:$0xff]
      %v237 = vld [vmem:[%s1] sm:$0xf]
      %v238 = vld [vmem:[%s1 + $0x4] sm:$0xf]
      %v239 = vld [vmem:[%s1 + $0x8] sm:$0xf]
      %v240 = vld [vmem:[%s1 + $0xc] sm:$0xf]
      %v241 = vld [vmem:[%s1 + $0x10] sm:$0xf]
      %v242 = vld [vmem:[%s1 + $0x14] sm:$0xf]
      %v243 = vld [vmem:[%s1 + $0x18] sm:$0xf]
      %v244 = vld [vmem:[%s1 + $0x1c] sm:$0xf]
      %v245 = vld [vmem:[%s1 + $0x20] sm:$0xf]
      %v246 = vld [vmem:[%s1 + $0x24] sm:$0xf]
      %v247 = vld [vmem:[%s1 + $0x28] sm:$0xf]
      %v248 = vld [vmem:[%s1 + $0x2c] sm:$0xf]
      %v249 = vld [vmem:[%s1 + $0x30] sm:$0xf]
      %v250 = vld [vmem:[%s1 + $0x34] sm:$0xf]
      %v251 = vld [vmem:[%s1 + $0x38] sm:$0xf]
      %v252 = vld [vmem:[%s1 + $0x3c] sm:$0xf]
      %v253 = vld [vmem:[%s1 + $0x40] sm:$0xf]
      %v254 = vld [vmem:[%s1 + $0x44] sm:$0xf]
      %v255 = vld [vmem:[%s1 + $0x48] sm:$0x3]
      %v288 = vunpack.c.l.b16 %v205
      %v289 = vunpack.c.h.b16 %v205
      %v290 = vunpack.c.l.b16 %v206
      %v291 = vunpack.c.h.b16 %v206
      %v292 = vunpack.c.l.b16 %v207
      %v293 = vunpack.c.h.b16 %v207
      %v294 = vunpack.c.l.b16 %v208
      %v295 = vunpack.c.h.b16 %v208
      %v296 = vunpack.c.l.b16 %v209
      %v297 = vunpack.c.h.b16 %v209
      %v298 = vunpack.c.l.b16 %v210
      %v299 = vunpack.c.h.b16 %v210
      %v300 = vunpack.c.l.b16 %v211
      %v301 = vunpack.c.h.b16 %v211
      %v302 = vunpack.c.l.b16 %v212
      %v303 = vunpack.c.h.b16 %v212
      %v304 = vunpack.c.l.b16 %v213
      %v305 = vunpack.c.h.b16 %v213
      %v306 = vunpack.c.l.b16 %v214
      %v307 = vunpack.c.h.b16 %v214
      %v308 = vunpack.c.l.b16 %v215
      %v309 = vunpack.c.h.b16 %v215
      %v310 = vunpack.c.l.b16 %v216
      %v311 = vunpack.c.h.b16 %v216
      %v312 = vunpack.c.l.b16 %v217
      %v313 = vunpack.c.h.b16 %v217
      %v314 = vunpack.c.l.b16 %v218
      %v315 = vunpack.c.h.b16 %v218
      %v316 = vunpack.c.l.b16 %v219
      %v317 = vunpack.c.h.b16 %v219
      %v318 = vunpack.c.l.b16 %v220
      %v319 = vunpack.c.h.b16 %v220
      %v320 = vunpack.c.l.b16 %v221
      %v321 = vunpack.c.h.b16 %v221
      %v322 = vunpack.c.l.b16 %v222
      %v323 = vunpack.c.h.b16 %v222
      %v324 = vunpack.c.l.b16 %v223
      %v325 = vunpack.c.h.b16 %v223
      %v326 = vunpack.c.l.b16 %v224
      %v327 = vunpack.c.h.b16 %v224
      %v328 = vunpack.c.l.b16 %v225
      %v329 = vunpack.c.h.b16 %v225
      %v330 = vunpack.c.l.b16 %v226
      %v331 = vunpack.c.h.b16 %v226
      %v332 = vunpack.c.l.b16 %v227
      %v333 = vunpack.c.h.b16 %v227
      %v334 = vunpack.c.l.b16 %v228
      %v335 = vunpack.c.h.b16 %v228
      %v336 = vunpack.c.l.b16 %v229
      %v337 = vunpack.c.h.b16 %v229
      %v338 = vunpack.c.l.b16 %v230
      %v339 = vunpack.c.h.b16 %v230
      %v340 = vunpack.c.l.b16 %v231
      %v341 = vunpack.c.h.b16 %v231
      %v342 = vunpack.c.l.b16 %v232
      %v343 = vunpack.c.h.b16 %v232
      %v344 = vunpack.c.l.b16 %v233
      %v345 = vunpack.c.h.b16 %v233
      %v346 = vunpack.c.l.b16 %v234
      %v347 = vunpack.c.h.b16 %v234
      %v348 = vunpack.c.l.b16 %v235
      %v349 = vunpack.c.h.b16 %v235
      %v350 = vunpack.c.l.b16 %v236
      %v351 = vunpack.c.h.b16 %v236
      %v352 = vpack.c.b16 %v290, %v288
      %v353 = vpack.c.b16 %v291, %v289
      %v354 = vpack.c.b16 %v294, %v292
      %v355 = vpack.c.b16 %v295, %v293
      %v356 = vpack.c.b16 %v298, %v296
      %v357 = vpack.c.b16 %v299, %v297
      %v358 = vpack.c.b16 %v302, %v300
      %v359 = vpack.c.b16 %v303, %v301
      %v360 = vpack.c.b16 %v306, %v304
      %v361 = vpack.c.b16 %v307, %v305
      %v362 = vpack.c.b16 %v310, %v308
      %v363 = vpack.c.b16 %v311, %v309
      %v364 = vpack.c.b16 %v314, %v312
      %v365 = vpack.c.b16 %v315, %v313
      %v366 = vpack.c.b16 %v318, %v316
      %v367 = vpack.c.b16 %v319, %v317
      %v368 = vpack.c.b16 %v322, %v320
      %v369 = vpack.c.b16 %v323, %v321
      %v370 = vpack.c.b16 %v326, %v324
      %v371 = vpack.c.b16 %v327, %v325
      %v372 = vpack.c.b16 %v330, %v328
      %v373 = vpack.c.b16 %v331, %v329
      %v374 = vpack.c.b16 %v334, %v332
      %v375 = vpack.c.b16 %v335, %v333
      %v376 = vpack.c.b16 %v338, %v336
      %v377 = vpack.c.b16 %v339, %v337
      %v378 = vpack.c.b16 %v342, %v340
      %v379 = vpack.c.b16 %v343, %v341
      %v380 = vpack.c.b16 %v346, %v344
      %v381 = vpack.c.b16 %v347, %v345
      %v382 = vpack.c.b16 %v350, %v348
      %v383 = vpack.c.b16 %v351, %v349
      %v419 = vunpack.c.l.b16 %v237
      %v420 = vunpack.c.l.b16 %v238
      %v421 = vunpack.c.l.b16 %v239
      %v422 = vunpack.c.l.b16 %v240
      %v423 = vunpack.c.l.b16 %v241
      %v424 = vunpack.c.l.b16 %v242
      %v425 = vunpack.c.l.b16 %v243
      %v426 = vunpack.c.l.b16 %v244
      %v427 = vunpack.c.l.b16 %v245
      %v428 = vunpack.c.l.b16 %v246
      %v429 = vunpack.c.l.b16 %v247
      %v430 = vunpack.c.l.b16 %v248
      %v431 = vunpack.c.l.b16 %v249
      %v432 = vunpack.c.l.b16 %v250
      %v433 = vunpack.c.l.b16 %v251
      %v434 = vunpack.c.l.b16 %v252
      %v435 = vunpack.c.l.b16 %v253
      %v436 = vunpack.c.l.b16 %v254
      %v437 = vunpack.c.l.b16 %v255
      %v438 = vpack.c.b16 %v420, %v419
      %v439 = vpack.c.b16 %v422, %v421
      %v440 = vpack.c.b16 %v424, %v423
      %v441 = vpack.c.b16 %v426, %v425
      %v442 = vpack.c.b16 %v428, %v427
      %v443 = vpack.c.b16 %v430, %v429
      %v444 = vpack.c.b16 %v432, %v431
      %v445 = vpack.c.b16 %v434, %v433
      %v446 = vpack.c.b16 %v436, %v435
      %v447 = vpack.c.b16 %v437, %v437
      %vm457 = vcmask 154624
      %v459 = vsel %vm457, %v353, 0
      %v462 = vsel %vm457, %v355, 0
      %v465 = vsel %vm457, %v357, 0
      %v468 = vsel %vm457, %v359, 0
      %v471 = vsel %vm457, %v361, 0
      %v474 = vsel %vm457, %v363, 0
      %v477 = vsel %vm457, %v365, 0
      %v480 = vsel %vm457, %v367, 0
      %v483 = vsel %vm457, %v369, 0
      %v486 = vsel %vm457, %v371, 0
      %v489 = vsel %vm457, %v373, 0
      %v492 = vsel %vm457, %v375, 0
      %v495 = vsel %vm457, %v377, 0
      %v498 = vsel %vm457, %v379, 0
      %v501 = vsel %vm457, %v381, 0
      %v504 = vsel %vm457, %v383, 0
      %vm506 = vcmask 1040384
      %vm507 = vcmask 1041408
      %v508 = vsel %vm506, 4294967295, 65535
      %v509 = vsel %vm507, %v508, 0
      %v511 = vand.u32 %v447, %v509
      %513 = vmatpush.bf16.msra.mxu0 %v445
      %514 = vmatpush.bf16.msra.mxu0 %v444
      %515 = vmatpush.bf16.msra.mxu0 %v443
      %516 = vmatpush.bf16.msra.mxu0 %v442
      %517 = vmatpush.bf16.msra.mxu0 %v441
      %518 = vmatpush.bf16.msra.mxu0 %v440
      %519 = vmatpush.bf16.msra.mxu0 %v439
      %520 = vmatpush.bf16.msra.mxu0 %v438
      %521 = vmatmul.bf16.gmra.mxu0 %v352
      %v522 = vpop.f32.mrf.mxu0
      %v523 = vadd.f32 0.0, %v522
      %v524 = vpop.f32.mrf.mxu0
      %v525 = vadd.f32 0.0, %v524
      %526 = vmatmul.bf16.gmra.mxu0 %v354
      %v527 = vpop.f32.mrf.mxu0
      %v528 = vadd.f32 0.0, %v527
      %v529 = vpop.f32.mrf.mxu0
      %v530 = vadd.f32 0.0, %v529
      %531 = vmatmul.bf16.gmra.mxu0 %v356
      %v532 = vpop.f32.mrf.mxu0
      %v533 = vadd.f32 0.0, %v532
      %v534 = vpop.f32.mrf.mxu0
      %v535 = vadd.f32 0.0, %v534
      %536 = vmatmul.bf16.gmra.mxu0 %v358
      %v537 = vpop.f32.mrf.mxu0
      %v538 = vadd.f32 0.0, %v537
      %v539 = vpop.f32.mrf.mxu0
      %v540 = vadd.f32 0.0, %v539
      %541 = vmatmul.bf16.gmra.mxu0 %v360
      %v542 = vpop.f32.mrf.mxu0
      %v543 = vadd.f32 0.0, %v542
      %v544 = vpop.f32.mrf.mxu0
      %v545 = vadd.f32 0.0, %v544
      %546 = vmatmul.bf16.gmra.mxu0 %v362
      %v547 = vpop.f32.mrf.mxu0
      %v548 = vadd.f32 0.0, %v547
      %v549 = vpop.f32.mrf.mxu0
      %v550 = vadd.f32 0.0, %v549
      %551 = vmatmul.bf16.gmra.mxu0 %v364
      %v552 = vpop.f32.mrf.mxu0
      %v553 = vadd.f32 0.0, %v552
      %v554 = vpop.f32.mrf.mxu0
      %v555 = vadd.f32 0.0, %v554
      %556 = vmatmul.bf16.gmra.mxu0 %v366
      %v557 = vpop.f32.mrf.mxu0
      %v558 = vadd.f32 0.0, %v557
      %v559 = vpop.f32.mrf.mxu0
      %v560 = vadd.f32 0.0, %v559
      %561 = vmatmul.bf16.gmra.mxu0 %v368
      %v562 = vpop.f32.mrf.mxu0
      %v563 = vadd.f32 0.0, %v562
      %v564 = vpop.f32.mrf.mxu0
      %v565 = vadd.f32 0.0, %v564
      %566 = vmatmul.bf16.gmra.mxu0 %v370
      %v567 = vpop.f32.mrf.mxu0
      %v568 = vadd.f32 0.0, %v567
      %v569 = vpop.f32.mrf.mxu0
      %v570 = vadd.f32 0.0, %v569
      %571 = vmatmul.bf16.gmra.mxu0 %v372
      %v572 = vpop.f32.mrf.mxu0
      %v573 = vadd.f32 0.0, %v572
      %v574 = vpop.f32.mrf.mxu0
      %v575 = vadd.f32 0.0, %v574
      %576 = vmatmul.bf16.gmra.mxu0 %v374
      %v577 = vpop.f32.mrf.mxu0
      %v578 = vadd.f32 0.0, %v577
      %v579 = vpop.f32.mrf.mxu0
      %v580 = vadd.f32 0.0, %v579
      %581 = vmatmul.bf16.gmra.mxu0 %v376
      %v582 = vpop.f32.mrf.mxu0
      %v583 = vadd.f32 0.0, %v582
      %v584 = vpop.f32.mrf.mxu0
      %v585 = vadd.f32 0.0, %v584
      %586 = vmatmul.bf16.gmra.mxu0 %v378
      %v587 = vpop.f32.mrf.mxu0
      %v588 = vadd.f32 0.0, %v587
      %v589 = vpop.f32.mrf.mxu0
      %v590 = vadd.f32 0.0, %v589
      %591 = vmatmul.bf16.gmra.mxu0 %v380
      %v592 = vpop.f32.mrf.mxu0
      %v593 = vadd.f32 0.0, %v592
      %v594 = vpop.f32.mrf.mxu0
      %v595 = vadd.f32 0.0, %v594
      %596 = vmatmul.bf16.gmra.mxu0 %v382
      %v597 = vpop.f32.mrf.mxu0
      %v598 = vadd.f32 0.0, %v597
      %v599 = vpop.f32.mrf.mxu0
      %v600 = vadd.f32 0.0, %v599
      %601 = vdwg.mxu0
      %602 = vmatpush.bf16.msra.mxu0 0
      %603 = vmatpush.bf16.msra.mxu0 0
      %604 = vmatpush.bf16.msra.mxu0 0
      %605 = vmatpush.bf16.msra.mxu0 0
      %606 = vmatpush.bf16.msra.mxu0 0
      %607 = vmatpush.bf16.msra.mxu0 0
      %608 = vmatpush.bf16.msra.mxu0 %v511
      %609 = vmatpush.bf16.msra.mxu0 %v446
      %610 = vmatmul.bf16.gmra.mxu0 %v459
      %v611 = vpop.f32.mrf.mxu0
      %v612 = vadd.f32 %v523, %v611
      %v613 = vpop.f32.mrf.mxu0
      %v614 = vadd.f32 %v525, %v613
      %615 = vmatmul.bf16.gmra.mxu0 %v462
      %v616 = vpop.f32.mrf.mxu0
      %v617 = vadd.f32 %v528, %v616
      %v618 = vpop.f32.mrf.mxu0
      %v619 = vadd.f32 %v530, %v618
      %620 = vmatmul.bf16.gmra.mxu0 %v465
      %v621 = vpop.f32.mrf.mxu0
      %v622 = vadd.f32 %v533, %v621
      %v623 = vpop.f32.mrf.mxu0
      %v624 = vadd.f32 %v535, %v623
      %625 = vmatmul.bf16.gmra.mxu0 %v468
      %v626 = vpop.f32.mrf.mxu0
      %v627 = vadd.f32 %v538, %v626
      %v628 = vpop.f32.mrf.mxu0
      %v629 = vadd.f32 %v540, %v628
      %630 = vmatmul.bf16.gmra.mxu0 %v471
      %v631 = vpop.f32.mrf.mxu0
      %v632 = vadd.f32 %v543, %v631
      %v633 = vpop.f32.mrf.mxu0
      %v634 = vadd.f32 %v545, %v633
      %635 = vmatmul.bf16.gmra.mxu0 %v474
      %v636 = vpop.f32.mrf.mxu0
      %v637 = vadd.f32 %v548, %v636
      %v638 = vpop.f32.mrf.mxu0
      %v639 = vadd.f32 %v550, %v638
      %640 = vmatmul.bf16.gmra.mxu0 %v477
      %v641 = vpop.f32.mrf.mxu0
      %v642 = vadd.f32 %v553, %v641
      %v643 = vpop.f32.mrf.mxu0
      %v644 = vadd.f32 %v555, %v643
      %645 = vmatmul.bf16.gmra.mxu0 %v480
      %v646 = vpop.f32.mrf.mxu0
      %v647 = vadd.f32 %v558, %v646
      %v648 = vpop.f32.mrf.mxu0
      %v649 = vadd.f32 %v560, %v648
      %650 = vmatmul.bf16.gmra.mxu0 %v483
      %v651 = vpop.f32.mrf.mxu0
      %v652 = vadd.f32 %v563, %v651
      %v653 = vpop.f32.mrf.mxu0
      %v654 = vadd.f32 %v565, %v653
      %655 = vmatmul.bf16.gmra.mxu0 %v486
      %v656 = vpop.f32.mrf.mxu0
      %v657 = vadd.f32 %v568, %v656
      %v658 = vpop.f32.mrf.mxu0
      %v659 = vadd.f32 %v570, %v658
      %660 = vmatmul.bf16.gmra.mxu0 %v489
      %v661 = vpop.f32.mrf.mxu0
      %v662 = vadd.f32 %v573, %v661
      %v663 = vpop.f32.mrf.mxu0
      %v664 = vadd.f32 %v575, %v663
      %665 = vmatmul.bf16.gmra.mxu0 %v492
      %v666 = vpop.f32.mrf.mxu0
      %v667 = vadd.f32 %v578, %v666
      %v668 = vpop.f32.mrf.mxu0
      %v669 = vadd.f32 %v580, %v668
      %670 = vmatmul.bf16.gmra.mxu0 %v495
      %v671 = vpop.f32.mrf.mxu0
      %v672 = vadd.f32 %v583, %v671
      %v673 = vpop.f32.mrf.mxu0
      %v674 = vadd.f32 %v585, %v673
      %675 = vmatmul.bf16.gmra.mxu0 %v498
      %v676 = vpop.f32.mrf.mxu0
      %v677 = vadd.f32 %v588, %v676
      %v678 = vpop.f32.mrf.mxu0
      %v679 = vadd.f32 %v590, %v678
      %680 = vmatmul.bf16.gmra.mxu0 %v501
      %v681 = vpop.f32.mrf.mxu0
      %v682 = vadd.f32 %v593, %v681
      %v683 = vpop.f32.mrf.mxu0
      %v684 = vadd.f32 %v595, %v683
      %685 = vmatmul.bf16.gmra.mxu0 %v504
      %v686 = vpop.f32.mrf.mxu0
      %v687 = vadd.f32 %v598, %v686
      %v688 = vpop.f32.mrf.mxu0
      %v689 = vadd.f32 %v600, %v688
      %690 = vdwg.mxu0
      %v691 = vld [vmem:[%s2] sm:$0x1]
      %v693 = vperm.slane %v691, 0
      %v695 = vmul.f32 %v612, %v693
      %v696 = vmul.f32 %v614, %v693
      %v697 = vmul.f32 %v617, %v693
      %v698 = vmul.f32 %v619, %v693
      %v699 = vmul.f32 %v622, %v693
      %v700 = vmul.f32 %v624, %v693
      %v701 = vmul.f32 %v627, %v693
      %v702 = vmul.f32 %v629, %v693
      %v703 = vmul.f32 %v632, %v693
      %v704 = vmul.f32 %v634, %v693
      %v705 = vmul.f32 %v637, %v693
      %v706 = vmul.f32 %v639, %v693
      %v707 = vmul.f32 %v642, %v693
      %v708 = vmul.f32 %v644, %v693
      %v709 = vmul.f32 %v647, %v693
      %v710 = vmul.f32 %v649, %v693
      %v711 = vmul.f32 %v652, %v693
      %v712 = vmul.f32 %v654, %v693
      %v713 = vmul.f32 %v657, %v693
      %v714 = vmul.f32 %v659, %v693
      %v715 = vmul.f32 %v662, %v693
      %v716 = vmul.f32 %v664, %v693
      %v717 = vmul.f32 %v667, %v693
      %v718 = vmul.f32 %v669, %v693
      %v719 = vmul.f32 %v672, %v693
      %v720 = vmul.f32 %v674, %v693
      %v721 = vmul.f32 %v677, %v693
      %v722 = vmul.f32 %v679, %v693
      %v723 = vmul.f32 %v682, %v693
      %v724 = vmul.f32 %v684, %v693
      %v725 = vmul.f32 %v687, %v693
      %v726 = vmul.f32 %v689, %v693
      %v727 = vld [vmem:[%s3] sm:$0x1]
      %v729 = vperm.slane %v727, 0
      %v731 = vadd.f32 %v695, %v729
      %v732 = vadd.f32 %v696, %v729
      %v733 = vadd.f32 %v697, %v729
      %v734 = vadd.f32 %v698, %v729
      %v735 = vadd.f32 %v699, %v729
      %v736 = vadd.f32 %v700, %v729
      %v737 = vadd.f32 %v701, %v729
      %v738 = vadd.f32 %v702, %v729
      %v739 = vadd.f32 %v703, %v729
      %v740 = vadd.f32 %v704, %v729
      %v741 = vadd.f32 %v705, %v729
      %v742 = vadd.f32 %v706, %v729
      %v743 = vadd.f32 %v707, %v729
      %v744 = vadd.f32 %v708, %v729
      %v745 = vadd.f32 %v709, %v729
      %v746 = vadd.f32 %v710, %v729
      %v747 = vadd.f32 %v711, %v729
      %v748 = vadd.f32 %v712, %v729
      %v749 = vadd.f32 %v713, %v729
      %v750 = vadd.f32 %v714, %v729
      %v751 = vadd.f32 %v715, %v729
      %v752 = vadd.f32 %v716, %v729
      %v753 = vadd.f32 %v717, %v729
      %v754 = vadd.f32 %v718, %v729
      %v755 = vadd.f32 %v719, %v729
      %v756 = vadd.f32 %v720, %v729
      %v757 = vadd.f32 %v721, %v729
      %v758 = vadd.f32 %v722, %v729
      %v759 = vadd.f32 %v723, %v729
      %v760 = vadd.f32 %v724, %v729
      %v761 = vadd.f32 %v725, %v729
      %v762 = vadd.f32 %v726, %v729
      %v763 = vmax.f32 %v731, 0.0
      %v764 = vmax.f32 %v732, 0.0
      %v765 = vmax.f32 %v733, 0.0
      %v766 = vmax.f32 %v734, 0.0
      %v767 = vmax.f32 %v735, 0.0
      %v768 = vmax.f32 %v736, 0.0
      %v769 = vmax.f32 %v737, 0.0
      %v770 = vmax.f32 %v738, 0.0
      %v771 = vmax.f32 %v739, 0.0
      %v772 = vmax.f32 %v740, 0.0
      %v773 = vmax.f32 %v741, 0.0
      %v774 = vmax.f32 %v742, 0.0
      %v775 = vmax.f32 %v743, 0.0
      %v776 = vmax.f32 %v744, 0.0
      %v777 = vmax.f32 %v745, 0.0
      %v778 = vmax.f32 %v746, 0.0
      %v779 = vmax.f32 %v747, 0.0
      %v780 = vmax.f32 %v748, 0.0
      %v781 = vmax.f32 %v749, 0.0
      %v782 = vmax.f32 %v750, 0.0
      %v783 = vmax.f32 %v751, 0.0
      %v784 = vmax.f32 %v752, 0.0
      %v785 = vmax.f32 %v753, 0.0
      %v786 = vmax.f32 %v754, 0.0
      %v787 = vmax.f32 %v755, 0.0
      %v788 = vmax.f32 %v756, 0.0
      %v789 = vmax.f32 %v757, 0.0
      %v790 = vmax.f32 %v758, 0.0
      %v791 = vmax.f32 %v759, 0.0
      %v792 = vmax.f32 %v760, 0.0
      %v793 = vmax.f32 %v761, 0.0
      %v794 = vmax.f32 %v762, 0.0
      %v795 = vpack.c.bf16 %v763, %v763
      %v796 = vpack.c.bf16 %v764, %v764
      %v797 = vpack.c.bf16 %v765, %v765
      %v798 = vpack.c.bf16 %v766, %v766
      %v799 = vpack.c.bf16 %v767, %v767
      %v800 = vpack.c.bf16 %v768, %v768
      %v801 = vpack.c.bf16 %v769, %v769
      %v802 = vpack.c.bf16 %v770, %v770
      %v803 = vpack.c.bf16 %v771, %v771
      %v804 = vpack.c.bf16 %v772, %v772
      %v805 = vpack.c.bf16 %v773, %v773
      %v806 = vpack.c.bf16 %v774, %v774
      %v807 = vpack.c.bf16 %v775, %v775
      %v808 = vpack.c.bf16 %v776, %v776
      %v809 = vpack.c.bf16 %v777, %v777
      %v810 = vpack.c.bf16 %v778, %v778
      %v811 = vpack.c.bf16 %v779, %v779
      %v812 = vpack.c.bf16 %v780, %v780
      %v813 = vpack.c.bf16 %v781, %v781
      %v814 = vpack.c.bf16 %v782, %v782
      %v815 = vpack.c.bf16 %v783, %v783
      %v816 = vpack.c.bf16 %v784, %v784
      %v817 = vpack.c.bf16 %v785, %v785
      %v818 = vpack.c.bf16 %v786, %v786
      %v819 = vpack.c.bf16 %v787, %v787
      %v820 = vpack.c.bf16 %v788, %v788
      %v821 = vpack.c.bf16 %v789, %v789
      %v822 = vpack.c.bf16 %v790, %v790
      %v823 = vpack.c.bf16 %v791, %v791
      %v824 = vpack.c.bf16 %v792, %v792
      %v825 = vpack.c.bf16 %v793, %v793
      %v826 = vpack.c.bf16 %v794, %v794
      %vm827 = vcmask 519168
      %828 = vst.msk [vmem:[%s202] sm:$0xf] %vm827, %v795
      %829 = vst.msk [vmem:[%s202 + $0x4] sm:$0xf] %vm827, %v796
      %830 = vst.msk [vmem:[%s202 + $0x8] sm:$0xf] %vm827, %v797
      %831 = vst.msk [vmem:[%s202 + $0xc] sm:$0xf] %vm827, %v798
      %832 = vst.msk [vmem:[%s202 + $0x10] sm:$0xf] %vm827, %v799
      %833 = vst.msk [vmem:[%s202 + $0x14] sm:$0xf] %vm827, %v800
      %834 = vst.msk [vmem:[%s202 + $0x18] sm:$0xf] %vm827, %v801
      %835 = vst.msk [vmem:[%s202 + $0x1c] sm:$0xf] %vm827, %v802
      %836 = vst.msk [vmem:[%s202 + $0x20] sm:$0xf] %vm827, %v803
      %837 = vst.msk [vmem:[%s202 + $0x24] sm:$0xf] %vm827, %v804
      %838 = vst.msk [vmem:[%s202 + $0x28] sm:$0xf] %vm827, %v805
      %839 = vst.msk [vmem:[%s202 + $0x2c] sm:$0xf] %vm827, %v806
      %840 = vst.msk [vmem:[%s202 + $0x30] sm:$0xf] %vm827, %v807
      %841 = vst.msk [vmem:[%s202 + $0x34] sm:$0xf] %vm827, %v808
      %842 = vst.msk [vmem:[%s202 + $0x38] sm:$0xf] %vm827, %v809
      %843 = vst.msk [vmem:[%s202 + $0x3c] sm:$0xf] %vm827, %v810
      %844 = vst.msk [vmem:[%s202 + $0x40] sm:$0xf] %vm827, %v811
      %845 = vst.msk [vmem:[%s202 + $0x44] sm:$0xf] %vm827, %v812
      %846 = vst.msk [vmem:[%s202 + $0x48] sm:$0xf] %vm827, %v813
      %847 = vst.msk [vmem:[%s202 + $0x4c] sm:$0xf] %vm827, %v814
      %848 = vst.msk [vmem:[%s202 + $0x50] sm:$0xf] %vm827, %v815
      %849 = vst.msk [vmem:[%s202 + $0x54] sm:$0xf] %vm827, %v816
      %850 = vst.msk [vmem:[%s202 + $0x58] sm:$0xf] %vm827, %v817
      %851 = vst.msk [vmem:[%s202 + $0x5c] sm:$0xf] %vm827, %v818
      %852 = vst.msk [vmem:[%s202 + $0x60] sm:$0xf] %vm827, %v819
      %853 = vst.msk [vmem:[%s202 + $0x64] sm:$0xf] %vm827, %v820
      %854 = vst.msk [vmem:[%s202 + $0x68] sm:$0xf] %vm827, %v821
      %855 = vst.msk [vmem:[%s202 + $0x6c] sm:$0xf] %vm827, %v822
      %856 = vst.msk [vmem:[%s202 + $0x70] sm:$0xf] %vm827, %v823
      %857 = vst.msk [vmem:[%s202 + $0x74] sm:$0xf] %vm827, %v824
      %858 = vst.msk [vmem:[%s202 + $0x78] sm:$0xf] %vm827, %v825
      %859 = vst.msk [vmem:[%s202 + $0x7c] sm:$0xf] %vm827, %v826
      %s860 = smul.u32 32, %s15
      %p861 = scmp.lt.s32.totalorder %s860, 63
      %s862 = scalar_select %p861, %s860, 63
      %s863 = smul.addr %s862, 4
      %s864 = scalar_lea.vmem %s4, %s863
      // Predicated region
      $region37: #{tpu_custom_call.1} parent=35 // pred_check
        %p865 = pneg %p122
      $region38: #{tpu_custom_call.1} parent=35 // pred_check_branch
        %867 = sbr.rel (%p865) target = $region40
      $region39: #{tpu_custom_call.1} parent=35 // pred_region
        %s868 = smul.u32 32, %s15
      $region40: #{tpu_custom_call.1} parent=35 // pred_fallthru
        _
    $region36: #{tpu_custom_call.1} parent=5 // pred_fallthru
      _
    %p869 = scmp.le.s32.totalorder 2, %s10
    // Predicated region
    $region41: #{tpu_custom_call.1} parent=5 // pred_check
      %p870 = pneg %p869
    $region42: #{tpu_custom_call.1} parent=5 // pred_check_branch
      %872 = sbr.rel (%p870) target = $region44
    $region43: #{tpu_custom_call.1} parent=5 // pred_region
      %s873 = ssub.s32 %s10, 2
      // Predicated region
      $region45: #{tpu_custom_call.1} parent=43 // pred_check
        %p874 = pneg %p128
      $region46: #{tpu_custom_call.1} parent=43 // pred_check_branch
        %876 = sbr.rel (%p874) target = $region48
      $region47: #{tpu_custom_call.1} parent=43 // pred_region
        %s877 = smul.u32 32, %s16
        %p878 = scmp.lt.s32.totalorder %s877, 63
        %s879 = scalar_select %p878, %s877, 63
        %s880 = smul.addr %s879, 4
        %s881 = scalar_lea.vmem %s4, %s880
      $region48: #{tpu_custom_call.1} parent=43 // pred_fallthru
        _
    $region44: #{tpu_custom_call.1} parent=5 // pred_fallthru
      _
  $region6: #{tpu_custom_call.1} parent=0 // loop_footer
    %s14 = sadd.s32 1, %s10
  $region7: #{tpu_custom_call.1} parent=0 // loop_footer_branch
    %9 = sbr.rel target = $region3
  $region8: #{tpu_custom_call.1} parent=0 // loop_exit
    _

</llo_original>
